<compile_context>
chip_gen: v7x
topology: tpu7x:2x2x1
jax: 0.10.0
libtpu: 0.0.40
codegen_flags: <defaults>
</compile_context>

<pallas_src>
import math
from functools import partial

import jax
import jax.numpy as jnp
from jax.experimental import pallas as pl
from jax.experimental.pallas import tpu as pltpu


def _round_up(n, m):
    return ((n + m - 1) // m) * m


def _cdiv(a, b):
    return -(-a // b)


def rmsnorm_kernel(x_ref, scale_ref, o_ref, *, d_real, eps):
    x = x_ref[...].astype(jnp.float32)                       # (row_block, D)
    # Lane block is exactly D, so the sum is over real features only.
    ms = jnp.sum(x * x, axis=-1, keepdims=True) * (1.0 / d_real)
    std = jnp.sqrt(ms)                                        # (row_block, 1)
    inv = 1.0 / (std + eps)                                   # exact: HBM-bound, VPU has slack
    o_ref[...] = (x * (scale_ref[...].astype(jnp.float32) * inv)).astype(o_ref.dtype)


def rmsnorm(x, scale, *, eps=1e-8):
    """x: (..., D) normalized over the last dim; scale: (D,)."""
    orig_shape = x.shape
    d = orig_shape[-1]
    rows = math.prod(orig_shape[:-1]) if len(orig_shape) > 1 else 1

    x2 = x.reshape(rows, d)
    scale2 = scale.reshape(1, d)

    itemsize = jnp.dtype(x.dtype).itemsize
    sub = {4: 8, 2: 16, 1: 32}.get(itemsize, 8)               # sublane packing multiple

    if rows <= sub:
        row_block = rows                                      # full-dim block (always legal)
        grid = 1
    else:
        # ~2 MiB input block hits the HBM-roofline knee even for narrow D ...
        target_block_bytes = 2 << 20
        # ... while the live working set (in/out double buffers + ~2 f32 temps)
        # stays under ~28 MiB so it fits v7x's 64 MiB VMEM and a raised v5e limit.
        vmem_budget = 28 << 20
        per_row_live = d * (4 * itemsize + 8)
        row_block = max(sub, (target_block_bytes // (itemsize * d)) // sub * sub)
        row_block = min(row_block, max(sub, (vmem_budget // per_row_live) // sub * sub))
        row_block = min(row_block, _round_up(rows, sub))
        grid = _cdiv(rows, row_block)
        # v7x has 2 TensorCores: keep the number of "parallel" steps even so both
        # cores get balanced work (no-op on single-TC v5e/v6e or tiny inputs).
        if grid % 2 == 1 and rows >= 2 * sub:
            grid += 1
            row_block = _round_up(_cdiv(rows, grid), sub)
            grid = _cdiv(rows, row_block)

    vmem_need = row_block * d * (4 * itemsize + 8) + (1 << 20)
    vmem_limit = int(min(max(vmem_need, 32 << 20), 48 << 20))

    kernel = partial(rmsnorm_kernel, d_real=float(d), eps=float(eps))
    out = pl.pallas_call(
        kernel,
        out_shape=jax.ShapeDtypeStruct((rows, d), x.dtype),
        grid_spec=pltpu.PrefetchScalarGridSpec(
            num_scalar_prefetch=0,
            grid=(grid,),
            in_specs=[
                pl.BlockSpec((row_block, d), lambda i: (i, 0)),  # x rows; ragged last block OK
                pl.BlockSpec((1, d), lambda i: (0, 0)),          # scale, resident
            ],
            out_specs=pl.BlockSpec((row_block, d), lambda i: (i, 0)),
        ),
        compiler_params=pltpu.CompilerParams(
            dimension_semantics=("parallel",),
            vmem_limit_bytes=vmem_limit),
        cost_estimate=pl.CostEstimate(
            flops=4 * rows * d,
            transcendentals=2 * rows,
            bytes_accessed=(2 * rows * d + d) * itemsize),
    )(x2, scale2)

    return out.reshape(orig_shape)


def reference(x, scale, eps=1e-8):
    """Plain-JAX replica of the PyTorch RMSNorm forward (is_bias=False)."""
    std = jnp.sqrt(jnp.mean(x * x, axis=-1, keepdims=True))
    return scale * (x / (std + eps))


# TODO(synk): is_bias=True variant (adds a per-feature bias after scaling) is not
# wired up; the spec's default construction uses is_bias=False.

if __name__ == "__main__":
    key = jax.random.PRNGKey(0)
    kx, ks, kx2, ks2 = jax.random.split(key, 4)

    # Case 1: batch=2, seq=64, dimension=128 (lane-dense last dim).
    B, T, D = 2, 64, 128
    x = jax.random.normal(kx, (B, T, D), dtype=jnp.float32)
    scale = 1.0 + 0.1 * jax.random.normal(ks, (D,), dtype=jnp.float32)
    out = jax.block_until_ready(rmsnorm(x, scale))
    ref = jax.block_until_ready(reference(x, scale))
    assert out.shape == (B, T, D)
    assert jnp.allclose(out, ref, rtol=2e-5, atol=2e-5), "mismatch vs reference (case 1)"

    # Case 2: ragged row count + D not a multiple of 128 exercises the
    # masked-write / full-dim-lane-block paths.
    B2, T2, D2 = 3, 37, 96
    xb = jax.random.normal(kx2, (B2, T2, D2), dtype=jnp.float32)
    sb = 1.0 + 0.1 * jax.random.normal(ks2, (D2,), dtype=jnp.float32)
    out2 = jax.block_until_ready(rmsnorm(xb, sb))
    ref2 = jax.block_until_ready(reference(xb, sb))
    assert out2.shape == (B2, T2, D2)
    assert jnp.allclose(out2, ref2, rtol=2e-5, atol=2e-5), "mismatch vs reference (case 2)"

    print("KERNEL_OK")
</pallas_src>

<mosaic_0001>
module attributes {stable_mosaic.version = 11 : i64} {
  func.func @rmsnorm_kernel(%arg0: i32, %arg1: memref<64x128xf32, #tpu.memory_space<vmem>>, %arg2: memref<1x128xf32, #tpu.memory_space<vmem>>, %arg3: memref<64x128xf32, #tpu.memory_space<vmem>>) attributes {dimension_semantics = [#tpu.dimension_semantics<parallel>], iteration_bounds = array<i64: 2>, scalar_prefetch = 0 : i64, scratch_operands = 0 : i64, tpu.core_type = #tpu.core_type<tc>, window_params = [{transform_indices = @transform_0, window_bounds = array<i64: 64, 128>}, {pipeline_mode = #tpu.pipeline_mode<synchronous>, transform_indices = @transform_1, window_bounds = array<i64: 1, 128>}, {transform_indices = @transform_2, window_bounds = array<i64: 64, 128>}]} {
    %c0 = arith.constant 0 : index
    %c0_0 = arith.constant 0 : index
    %0 = vector.load %arg1[%c0, %c0_0] : memref<64x128xf32, #tpu.memory_space<vmem>>, vector<64x128xf32>
    %1 = arith.mulf %0, %0 : vector<64x128xf32>
    %cst = arith.constant dense<0.000000e+00> : vector<64xf32>
    %2 = vector.multi_reduction <add>, %1, %cst [1] : vector<64x128xf32> to vector<64xf32>
    %3 = vector.shape_cast %2 : vector<64xf32> to vector<64x1xf32>
    %cst_1 = arith.constant 7.812500e-03 : f32
    %4 = vector.broadcast %cst_1 : f32 to vector<64x1xf32>
    %5 = arith.mulf %3, %4 : vector<64x1xf32>
    %6 = math.sqrt %5 : vector<64x1xf32>
    %cst_2 = arith.constant 9.99999993E-9 : f32
    %7 = vector.broadcast %cst_2 : f32 to vector<64x1xf32>
    %8 = arith.addf %6, %7 : vector<64x1xf32>
    %cst_3 = arith.constant 1.000000e+00 : f32
    %9 = vector.broadcast %cst_3 : f32 to vector<64x1xf32>
    %10 = arith.divf %9, %8 : vector<64x1xf32>
    %c0_4 = arith.constant 0 : index
    %c0_5 = arith.constant 0 : index
    %11 = vector.load %arg2[%c0_4, %c0_5] : memref<1x128xf32, #tpu.memory_space<vmem>>, vector<1x128xf32>
    %12 = vector.broadcast %11 : vector<1x128xf32> to vector<64x128xf32>
    %13 = vector.broadcast %10 : vector<64x1xf32> to vector<64x128xf32>
    %14 = arith.mulf %12, %13 : vector<64x128xf32>
    %15 = arith.mulf %0, %14 : vector<64x128xf32>
    %c0_6 = arith.constant 0 : index
    %c0_7 = arith.constant 0 : index
    %16 = vector.load %arg3[%c0_6, %c0_7] : memref<64x128xf32, #tpu.memory_space<vmem>>, vector<64x128xf32>
    tpu.vector_store %arg3[%c0_6, %c0_7], %15 {strides = array<i32>} : memref<64x128xf32, #tpu.memory_space<vmem>>, vector<64x128xf32>,
    return
  }
  func.func @transform_0(%arg0: i32) -> (i32, i32) {
    %c0_i32 = arith.constant 0 : i32
    %c0_i32_0 = arith.constant 0 : i32
    return %arg0, %c0_i32 : i32, i32
  }
  func.func @transform_1(%arg0: i32) -> (i32, i32) {
    %c0_i32 = arith.constant 0 : i32
    %c0_i32_0 = arith.constant 0 : i32
    %c0_i32_1 = arith.constant 0 : i32
    return %c0_i32, %c0_i32_0 : i32, i32
  }
  func.func @transform_2(%arg0: i32) -> (i32, i32) {
    %c0_i32 = arith.constant 0 : i32
    %c0_i32_0 = arith.constant 0 : i32
    return %arg0, %c0_i32 : i32, i32
  }
}

</mosaic_0001>

<llo_original>
// kernel: tpu_custom_call.1
$region0: #{tpu_custom_call.1}
  #allocation0 [shape = 'u32[]', space=smem, size = 0x4, offset = 0x4, fixed_abs, tag = 'smem constant byte address 0x4 - core index']
  #allocation1 [shape = 'u32[144,128]{1,0:T(1,128)}', space=vmem, size = 0x12000, scoped, tag = 'internal scratch']
  %s0 = inlined_call_operand.hbm [shape: f32[128,128], index: 0, kind: input, shape index: {}]
  %s1 = inlined_call_operand.vmem [shape: f32[1,128], index: 1, kind: input, shape index: {}]
  %s2 = inlined_call_operand.hbm [shape: f32[128,128], index: 2, kind: output, shape index: {}]
  %s3 = sld [smem:[#allocation0]]
  $region45: #{tpu_custom_call.1} parent=0
    _
  %s5 = ssub.s32 1, %s3
  %s6 = scalar_select 0, %s5, %s3
  $region1: #{tpu_custom_call.1} parent=0
    #allocation2 [shape = 'u8[65536]{0}', space=vmem, size = 0x10000, scoped, tag = 'input window, operand 0']
    #allocation3 [shape = 's32[2]{0}', space=sflag, size = 0x8, scoped, tag = 'scoped memory for tpu_custom_call.1']
    #allocation4 [shape = 's32[2]{0}', space=sflag, size = 0x8, scoped, tag = 'scoped memory for tpu_custom_call.1']
    #allocation5 [shape = 'u8[65536]{0}', space=vmem, size = 0x10000, scoped, tag = 'output window, operand 0']
    %7 = vsyncpa [#allocation3], 0
    %s8 = scalar_lea.sflag [#allocation3], 1
    %9 = vsyncpa %s8, 0
    %10 = vsyncpa [#allocation4], 0
    %s11 = scalar_lea.sflag [#allocation4], 1
    %12 = vsyncpa %s11, 0
    loop: start=0, step=1, limit=4
    $region2: #{tpu_custom_call.1} parent=1 // loop_pre_header
      _
    $region3: #{tpu_custom_call.1} parent=1 // loop_header
      %s14 = sphi 0, %s18
      %p15 = scmp.ge.s32.totalorder %s14, 4
      %s24 = sphi 0, %s26
      %s27 = sphi 0, %s24
      %s28 = sphi 0, %s27
      %s44 = sphi 0, %s28
      %s48 = sphi 0, %s48
      %s50 = sphi 0, %s48
      %s51 = sphi 0, %s50
      %s65 = sphi 0, %s51
      %s71 = sphi 0, %s73
      %s74 = sphi 0, %s71
      %s75 = sphi 0, %s74
      %s91 = sphi 0, %s75
    $region4: #{tpu_custom_call.1} parent=1 // loop_header_branch
      %17 = sbr.rel (%p15) target = $region8
    $region5: #{tpu_custom_call.1} parent=1 // loop_body
      %s19 = ssub.s32 %s14, 1
      %s20 = ssub.s32 %s14, 2
      %s21 = sadd.s32 %s14, 1
      %s22 = ssub.s32 %s14, %s21
      %p23 = scmp.eq.s32.totalorder %s22, 0
      %s25 = sadd.s32 %s24, 1
      %s26 = scalar_select %p23, %s24, %s25
      %p29 = pneg %p23
      %p30 = scmp.eq.s32.totalorder %s14, 1
      %p31 = por %p29, %p30
      %p32 = scmp.ne.s32.totalorder %s24, %s27
      %p33 = scmp.eq.s32.totalorder %s14, 0
      %p34 = por %p32, %p33
      %p35 = scmp.ne.s32.totalorder %s24, %s27
      %p36 = scmp.eq.s32.totalorder %s19, 1
      %p37 = por %p35, %p36
      %p38 = scmp.ne.s32.totalorder %s27, %s28
      %p39 = scmp.eq.s32.totalorder %s19, 0
      %p40 = por %p38, %p39
      %p41 = scmp.ne.s32.totalorder %s27, %s28
      %p42 = scmp.eq.s32.totalorder %s20, 1
      %p43 = por %p41, %p42
      %p45 = scmp.ne.s32.totalorder %s28, %s44
      %p46 = scmp.eq.s32.totalorder %s20, 0
      %p47 = por %p45, %p46
      %s49 = sadd.s32 %s48, 1
      %p52 = scmp.eq.s32.totalorder %s14, 1
      %p53 = scmp.ne.s32.totalorder %s48, %s50
      %p54 = scmp.eq.s32.totalorder %s14, 0
      %p55 = por %p53, %p54
      %p56 = scmp.ne.s32.totalorder %s48, %s50
      %p57 = scmp.eq.s32.totalorder %s19, 1
      %p58 = por %p56, %p57
      %p59 = scmp.ne.s32.totalorder %s50, %s51
      %p60 = scmp.eq.s32.totalorder %s19, 0
      %p61 = por %p59, %p60
      %p62 = scmp.ne.s32.totalorder %s50, %s51
      %p63 = scmp.eq.s32.totalorder %s20, 1
      %p64 = por %p62, %p63
      %p66 = scmp.ne.s32.totalorder %s51, %s65
      %p67 = scmp.eq.s32.totalorder %s20, 0
      %p68 = por %p66, %p67
      %s69 = ssub.s32 %s14, %s21
      %p70 = scmp.eq.s32.totalorder %s69, 0
      %s72 = sadd.s32 %s71, 1
      %s73 = scalar_select %p70, %s71, %s72
      %p76 = pneg %p70
      %p77 = scmp.eq.s32.totalorder %s14, 1
      %p78 = por %p76, %p77
      %p79 = scmp.ne.s32.totalorder %s71, %s74
      %p80 = scmp.eq.s32.totalorder %s14, 0
      %p81 = por %p79, %p80
      %p82 = scmp.ne.s32.totalorder %s71, %s74
      %p83 = scmp.eq.s32.totalorder %s19, 1
      %p84 = por %p82, %p83
      %p85 = scmp.ne.s32.totalorder %s74, %s75
      %p86 = scmp.eq.s32.totalorder %s19, 0
      %p87 = por %p85, %p86
      %p88 = scmp.ne.s32.totalorder %s74, %s75
      %p89 = scmp.eq.s32.totalorder %s20, 1
      %p90 = por %p88, %p89
      %p92 = scmp.ne.s32.totalorder %s75, %s91
      %p93 = scmp.eq.s32.totalorder %s20, 0
      %p94 = por %p92, %p93
      %p95 = scmp.le.s32.totalorder 1, %s14
      %p96 = scmp.lt.s32.totalorder %s14, 3
      %p97 = pnand %p95, %p96
      %p98 = pneg %p97
      // Predicated region
      $region9: #{tpu_custom_call.1} parent=5 // pred_check
        _
      $region10: #{tpu_custom_call.1} parent=5 // pred_check_branch
        %100 = sbr.rel (%p97) target = $region12
      $region11: #{tpu_custom_call.1} parent=5 // pred_region
        %s101 = ssub.s32 %s14, 1
        // Predicated region
        $region13: #{tpu_custom_call.1} parent=11 // pred_check
          %p102 = pneg %p61
        $region14: #{tpu_custom_call.1} parent=11 // pred_check_branch
          %104 = sbr.rel (%p102) target = $region16
        $region15: #{tpu_custom_call.1} parent=11 // pred_region
          _
        $region16: #{tpu_custom_call.1} parent=11 // pred_fallthru
          _
      $region12: #{tpu_custom_call.1} parent=5 // pred_fallthru
        _
      %p105 = scmp.lt.s32.totalorder %s14, 2
      // Predicated region
      $region17: #{tpu_custom_call.1} parent=5 // pred_check
        %p106 = pneg %p105
      $region18: #{tpu_custom_call.1} parent=5 // pred_check_branch
        %108 = sbr.rel (%p106) target = $region20
      $region19: #{tpu_custom_call.1} parent=5 // pred_region
        // Predicated region
        $region21: #{tpu_custom_call.1} parent=19 // pred_check
          %p109 = pneg %p34
        $region22: #{tpu_custom_call.1} parent=19 // pred_check_branch
          %111 = sbr.rel (%p109) target = $region24
        $region23: #{tpu_custom_call.1} parent=19 // pred_region
          %s112 = sand.u32 %s24, 1
          %s113 = scalar_lea.sflag [#allocation3], %s112
          %s114 = sand.u32 %s24, 1
          %s115 = smul.addr %s114, 64
          %s116 = scalar_lea.vmem [#allocation2], %s115
          %s117 = smul.u32 8, %s14
          %s119 = ssub.s32 1024, 1024
          %120 = vsyncadd %s113, %s119
          %s121 = smul.addr %s117, 128
          %s122 = scalar_lea.hbm %s0, %s121
          %s123 = sshll.u32 %s116, 4
          %s124 = int_to_ptr.vmem [resolvable:$true] %s123
          %129 = dma.hbm_to_vmem [thread:$0]  %s122, 1024, %s124, %s113, 128, 128, 8
        $region24: #{tpu_custom_call.1} parent=19 // pred_fallthru
          _
      $region20: #{tpu_custom_call.1} parent=5 // pred_fallthru
        _
      %p130 = scmp.le.s32.totalorder 1, %s14
      %p131 = scmp.lt.s32.totalorder %s14, 3
      %p132 = pnand %p130, %p131
      %p133 = pneg %p132
      // Predicated region
      $region25: #{tpu_custom_call.1} parent=5 // pred_check
        _
      $region26: #{tpu_custom_call.1} parent=5 // pred_check_branch
        %135 = sbr.rel (%p132) target = $region28
      $region27: #{tpu_custom_call.1} parent=5 // pred_region
        %s136 = ssub.s32 %s14, 1
        %s137 = sand.u32 %s27, 1
        %s138 = scalar_lea.sflag [#allocation3], %s137
        %s139 = sand.u32 %s27, 1
        %s140 = smul.addr %s139, 64
        %s141 = scalar_lea.vmem [#allocation2], %s140
        // Predicated region
        $region29: #{tpu_custom_call.1} parent=27 // pred_check
          %p142 = pneg %p40
        $region30: #{tpu_custom_call.1} parent=27 // pred_check_branch
          %144 = sbr.rel (%p142) target = $region32
        $region31: #{tpu_custom_call.1} parent=27 // pred_region
          %145 = dma.done %s138, 1024
        $region32: #{tpu_custom_call.1} parent=27 // pred_fallthru
          _
        %s146 = sand.u32 %s27, 1
        %s147 = scalar_lea.sflag [#allocation3], %s146
        %s148 = sand.u32 %s27, 1
        %s149 = smul.addr %s148, 64
        %s150 = scalar_lea.vmem [#allocation2], %s149
        %p151 = pneg %p40
        %p152 = pneg %p37
        %p153 = pneg %p61
        %p154 = pneg %p58
        %p155 = pneg %p87
        %p156 = pneg %p84
        %s157 = sand.u32 %s74, 1
        %s158 = scalar_lea.sflag [#allocation4], %s157
        %s159 = sand.u32 %s74, 1
        %s160 = smul.addr %s159, 64
        %s161 = scalar_lea.vmem [#allocation5], %s160
        %s162 = smul.u32 8, %s19
        %s163 = smul.u32 8, %s19
        %v164 = vld [vmem:[%s141] sm:$0xff]
        %v165 = vld [vmem:[%s141 + $0x8] sm:$0xff]
        %v166 = vld [vmem:[%s141 + $0x10] sm:$0xff]
        %v167 = vld [vmem:[%s141 + $0x18] sm:$0xff]
        %v168 = vld [vmem:[%s141 + $0x20] sm:$0xff]
        %v169 = vld [vmem:[%s141 + $0x28] sm:$0xff]
        %v170 = vld [vmem:[%s141 + $0x30] sm:$0xff]
        %v171 = vld [vmem:[%s141 + $0x38] sm:$0xff]
        %v172 = vmul.f32 %v164, %v164
        %v173 = vmul.f32 %v165, %v165
        %v174 = vmul.f32 %v166, %v166
        %v175 = vmul.f32 %v167, %v167
        %v176 = vmul.f32 %v168, %v168
        %v177 = vmul.f32 %v169, %v169
        %v178 = vmul.f32 %v170, %v170
        %v179 = vmul.f32 %v171, %v171
        %180 = vadd.xlane.f32.xlu0 %v172
        %v181 = vpop.xlane.xlu0 %180
        %182 = vadd.xlane.f32.xlu0 %v173
        %v183 = vpop.xlane.xlu0 %182
        %184 = vadd.xlane.f32.xlu0 %v174
        %v185 = vpop.xlane.xlu0 %184
        %186 = vadd.xlane.f32.xlu0 %v175
        %v187 = vpop.xlane.xlu0 %186
        %188 = vadd.xlane.f32.xlu0 %v176
        %v189 = vpop.xlane.xlu0 %188
        %190 = vadd.xlane.f32.xlu0 %v177
        %v191 = vpop.xlane.xlu0 %190
        %192 = vadd.xlane.f32.xlu0 %v178
        %v193 = vpop.xlane.xlu0 %192
        %194 = vadd.xlane.f32.xlu0 %v179
        %v195 = vpop.xlane.xlu0 %194
        %v196 = vmul.f32 %v181, 0.0078125
        %v197 = vmul.f32 %v183, 0.0078125
        %v198 = vmul.f32 %v185, 0.0078125
        %v199 = vmul.f32 %v187, 0.0078125
        %v200 = vmul.f32 %v189, 0.0078125
        %v201 = vmul.f32 %v191, 0.0078125
        %v202 = vmul.f32 %v193, 0.0078125
        %v203 = vmul.f32 %v195, 0.0078125
        %v204 = vrsqrt.pop %v196
        %v205 = vmul.f32 %v196, %v204
        %vm206 = vcmp.eq.f32.partialorder %v196, inf
        %v207 = vsel %vm206, %v196, %v205
        %vm208 = vcmp.eq.f32.partialorder %v196, 0.0
        %v209 = vand.u32 %v196, 2147483648
        %v210 = vsel %vm208, %v209, %v207
        %v211 = vrsqrt.pop %v197
        %v212 = vmul.f32 %v197, %v211
        %vm213 = vcmp.eq.f32.partialorder %v197, inf
        %v214 = vsel %vm213, %v197, %v212
        %vm215 = vcmp.eq.f32.partialorder %v197, 0.0
        %v216 = vand.u32 %v197, 2147483648
        %v217 = vsel %vm215, %v216, %v214
        %v218 = vrsqrt.pop %v198
        %v219 = vmul.f32 %v198, %v218
        %vm220 = vcmp.eq.f32.partialorder %v198, inf
        %v221 = vsel %vm220, %v198, %v219
        %vm222 = vcmp.eq.f32.partialorder %v198, 0.0
        %v223 = vand.u32 %v198, 2147483648
        %v224 = vsel %vm222, %v223, %v221
        %v225 = vrsqrt.pop %v199
        %v226 = vmul.f32 %v199, %v225
        %vm227 = vcmp.eq.f32.partialorder %v199, inf
        %v228 = vsel %vm227, %v199, %v226
        %vm229 = vcmp.eq.f32.partialorder %v199, 0.0
        %v230 = vand.u32 %v199, 2147483648
        %v231 = vsel %vm229, %v230, %v228
        %v232 = vrsqrt.pop %v200
        %v233 = vmul.f32 %v200, %v232
        %vm234 = vcmp.eq.f32.partialorder %v200, inf
        %v235 = vsel %vm234, %v200, %v233
        %vm236 = vcmp.eq.f32.partialorder %v200, 0.0
        %v237 = vand.u32 %v200, 2147483648
        %v238 = vsel %vm236, %v237, %v235
        %v239 = vrsqrt.pop %v201
        %v240 = vmul.f32 %v201, %v239
        %vm241 = vcmp.eq.f32.partialorder %v201, inf
        %v242 = vsel %vm241, %v201, %v240
        %vm243 = vcmp.eq.f32.partialorder %v201, 0.0
        %v244 = vand.u32 %v201, 2147483648
        %v245 = vsel %vm243, %v244, %v242
        %v246 = vrsqrt.pop %v202
        %v247 = vmul.f32 %v202, %v246
        %vm248 = vcmp.eq.f32.partialorder %v202, inf
        %v249 = vsel %vm248, %v202, %v247
        %vm250 = vcmp.eq.f32.partialorder %v202, 0.0
        %v251 = vand.u32 %v202, 2147483648
        %v252 = vsel %vm250, %v251, %v249
        %v253 = vrsqrt.pop %v203
        %v254 = vmul.f32 %v203, %v253
        %vm255 = vcmp.eq.f32.partialorder %v203, inf
        %v256 = vsel %vm255, %v203, %v254
        %vm257 = vcmp.eq.f32.partialorder %v203, 0.0
        %v258 = vand.u32 %v203, 2147483648
        %v259 = vsel %vm257, %v258, %v256
        %v260 = vadd.f32 %v210, 1e-08
        %v261 = vadd.f32 %v217, 1e-08
        %v262 = vadd.f32 %v224, 1e-08
        %v263 = vadd.f32 %v231, 1e-08
        %v264 = vadd.f32 %v238, 1e-08
        %v265 = vadd.f32 %v245, 1e-08
        %v266 = vadd.f32 %v252, 1e-08
        %v267 = vadd.f32 %v259, 1e-08
        %v268 = vrcp.pop %v260
        %v269 = vmul.f32 1.0, %v268
        %v270 = vrcp.pop %v261
        %v271 = vmul.f32 1.0, %v270
        %v272 = vrcp.pop %v262
        %v273 = vmul.f32 1.0, %v272
        %v274 = vrcp.pop %v263
        %v275 = vmul.f32 1.0, %v274
        %v276 = vrcp.pop %v264
        %v277 = vmul.f32 1.0, %v276
        %v278 = vrcp.pop %v265
        %v279 = vmul.f32 1.0, %v278
        %v280 = vrcp.pop %v266
        %v281 = vmul.f32 1.0, %v280
        %v282 = vrcp.pop %v267
        %v283 = vmul.f32 1.0, %v282
        %v284 = vld [vmem:[%s1] sm:$0x1]
        %v286 = vlaneseq
        %v287 = vshrl.u32 %v286, 7
        %v288 = vsub.s32 0, %v287
        %v289 = vrot.slane %v284, %v288
        %v291 = vmul.f32 %v289, %v269
        %v292 = vmul.f32 %v289, %v271
        %v293 = vmul.f32 %v289, %v273
        %v294 = vmul.f32 %v289, %v275
        %v295 = vmul.f32 %v289, %v277
        %v296 = vmul.f32 %v289, %v279
        %v297 = vmul.f32 %v289, %v281
        %v298 = vmul.f32 %v289, %v283
        %v299 = vmul.f32 %v164, %v291
        %v300 = vmul.f32 %v165, %v292
        %v301 = vmul.f32 %v166, %v293
        %v302 = vmul.f32 %v167, %v294
        %v303 = vmul.f32 %v168, %v295
        %v304 = vmul.f32 %v169, %v296
        %v305 = vmul.f32 %v170, %v297
        %v306 = vmul.f32 %v171, %v298
        %307 = vst [vmem:[%s161] sm:$0xff] %v299
        %308 = vst [vmem:[%s161 + $0x8] sm:$0xff] %v300
        %309 = vst [vmem:[%s161 + $0x10] sm:$0xff] %v301
        %310 = vst [vmem:[%s161 + $0x18] sm:$0xff] %v302
        %311 = vst [vmem:[%s161 + $0x20] sm:$0xff] %v303
        %312 = vst [vmem:[%s161 + $0x28] sm:$0xff] %v304
        %313 = vst [vmem:[%s161 + $0x30] sm:$0xff] %v305
        %314 = vst [vmem:[%s161 + $0x38] sm:$0xff] %v306
        %s315 = sand.u32 %s74, 1
        %s316 = scalar_lea.sflag [#allocation4], %s315
        %s317 = sand.u32 %s74, 1
        %s318 = smul.addr %s317, 64
        %s319 = scalar_lea.vmem [#allocation5], %s318
        // Predicated region
        $region33: #{tpu_custom_call.1} parent=27 // pred_check
          %p320 = pneg %p84
        $region34: #{tpu_custom_call.1} parent=27 // pred_check_branch
          %322 = sbr.rel (%p320) target = $region36
        $region35: #{tpu_custom_call.1} parent=27 // pred_region
          %s323 = smul.u32 8, %s19
          %s325 = ssub.s32 1024, 1024
          %326 = vsyncadd %s316, %s325
          %s327 = smul.addr %s323, 128
          %s328 = scalar_lea.hbm %s2, %s327
          %s329 = sshll.u32 %s319, 4
          %s330 = int_to_ptr.vmem [resolvable:$true] %s329
          %335 = dma.vmem_to_hbm [thread:$0]  %s330, 1024, %s328, %s316, 128, 128, 8
        $region36: #{tpu_custom_call.1} parent=27 // pred_fallthru
          _
      $region28: #{tpu_custom_call.1} parent=5 // pred_fallthru
        _
      %p336 = scmp.le.s32.totalorder 2, %s14
      // Predicated region
      $region37: #{tpu_custom_call.1} parent=5 // pred_check
        %p337 = pneg %p336
      $region38: #{tpu_custom_call.1} parent=5 // pred_check_branch
        %339 = sbr.rel (%p337) target = $region40
      $region39: #{tpu_custom_call.1} parent=5 // pred_region
        %s340 = ssub.s32 %s14, 2
        // Predicated region
        $region41: #{tpu_custom_call.1} parent=39 // pred_check
          %p341 = pneg %p90
        $region42: #{tpu_custom_call.1} parent=39 // pred_check_branch
          %343 = sbr.rel (%p341) target = $region44
        $region43: #{tpu_custom_call.1} parent=39 // pred_region
          %s344 = sand.u32 %s75, 1
          %s345 = scalar_lea.sflag [#allocation4], %s344
          %s346 = sand.u32 %s75, 1
          %s347 = smul.addr %s346, 64
          %s348 = scalar_lea.vmem [#allocation5], %s347
          %349 = dma.done %s345, 1024
        $region44: #{tpu_custom_call.1} parent=39 // pred_fallthru
          _
      $region40: #{tpu_custom_call.1} parent=5 // pred_fallthru
        _
    $region6: #{tpu_custom_call.1} parent=1 // loop_footer
      %s18 = sadd.s32 1, %s14
    $region7: #{tpu_custom_call.1} parent=1 // loop_footer_branch
      %13 = sbr.rel target = $region3
    $region8: #{tpu_custom_call.1} parent=1 // loop_exit
      _
    %350 = vsyncpa [#allocation3], 1
    %s351 = scalar_lea.sflag [#allocation3], 1
    %352 = vsyncpa %s351, 1
    %353 = vsyncpa [#allocation4], 1
    %s354 = scalar_lea.sflag [#allocation4], 1
    %355 = vsyncpa %s354, 1

</llo_original>
